<compile_context>
chip_gen: v7x
topology: tpu7x:2x2x1
jax: 0.10.0
libtpu: 0.0.40
codegen_flags: <defaults>
</compile_context>

<pallas_src>
import math

import jax
import jax.numpy as jnp
from jax.experimental import pallas as pl
from jax.experimental.pallas import tpu as pltpu

LANE = 128


def _round_up(x, m):
    return ((x + m - 1) // m) * m


def _choose_batch_tile(b, batch_tile=256):
    """Pick (tile, padded_batch).  >=2 grid steps for larger batches (v7x megacore)."""
    bp = _round_up(max(b, 1), 8)
    tb = min(batch_tile, bp)
    if bp // tb < 2 and bp >= 16:
        tb = _round_up(pl.cdiv(bp, 2), 8)
    bp = _round_up(bp, tb)
    return tb, bp


# ---------------------------------------------------------------------------
# Effective NoisyLinear weights: fresh N(0,1) eps per forward, combined in f32,
# weights cast to bf16 for the MXU.  (Runs as one fused XLA elementwise op.)
# ---------------------------------------------------------------------------
def _effective_noisy_weights(params, noise_key):
    k4w, k4b, k5w, k5b = jax.random.split(noise_key, 4)
    e4w = jax.random.normal(k4w, params["w4"].shape, jnp.float32)
    e4b = jax.random.normal(k4b, params["b4"].shape, jnp.float32)
    e5w = jax.random.normal(k5w, params["w5"].shape, jnp.float32)
    e5b = jax.random.normal(k5b, params["b5"].shape, jnp.float32)
    w4e = (params["w4"] + params["s4w"] * e4w).astype(jnp.bfloat16)
    b4e = params["b4"] + params["s4b"] * e4b
    w5e = (params["w5"] + params["s5w"] * e5w).astype(jnp.bfloat16)
    b5e = params["b5"] + params["s5b"] * e5b
    return w4e, b4e, w5e, b5e


# ---------------------------------------------------------------------------
# The single MLP kernel: batch-tiled, weights VMEM-resident, bf16 MXU matmuls
# with f32 accumulation.
# ---------------------------------------------------------------------------
def _noisy_dqn_kernel(x_ref,
                      w1_ref, b1_ref, w2_ref, b2_ref, w3_ref, b3_ref,
                      w4_ref, b4_ref, w5_ref, b5_ref,
                      out_ref):
    def dense(h, w_ref, b_ref, relu=True):
        y = jnp.dot(h.astype(jnp.bfloat16), w_ref[...],
                    preferred_element_type=jnp.float32) + b_ref[...]
        return jnp.maximum(y, 0.0) if relu else y

    h = x_ref[...]                               # fx = x/5 is folded into w1
    h = dense(h, w1_ref, b1_ref)                 # Linear(obs, 64) + ReLU
    h = dense(h, w2_ref, b2_ref)                 # Linear(64, 32) + ReLU
    h = dense(h, w3_ref, b3_ref)                 # Linear(32, 32) + ReLU
    h = dense(h, w4_ref, b4_ref)                 # NoisyLinear(32, 512) + ReLU
    out_ref[...] = dense(h, w5_ref, b5_ref, relu=False)  # NoisyLinear(512, A)


def noisy_dqn_forward(x, params, *, n_actions, noise_key, batch_tile=256):
    """NoisyDQN forward.  x: (B, obs_dim) float.  Fresh Gaussian noise per call."""
    b, obs_dim = x.shape
    w4e, b4e, w5e, b5e = _effective_noisy_weights(params, noise_key)

    tb, bp = _choose_batch_tile(b, batch_tile)
    x_pad = jnp.pad(x.astype(jnp.float32), ((0, bp - b), (0, 0)))
    act_p = w5e.shape[1]

    weights = (params["w1"], params["b1"], params["w2"], params["b2"],
               params["w3"], params["b3"], w4e, b4e, w5e, b5e)
    in_specs = [pl.BlockSpec((tb, obs_dim), lambda i: (i, 0))] + \
               [pl.BlockSpec(w.shape, lambda i: (0, 0)) for w in weights]

    out = pl.pallas_call(
        _noisy_dqn_kernel,
        out_shape=jax.ShapeDtypeStruct((bp, act_p), jnp.float32),
        grid=(bp // tb,),
        in_specs=in_specs,
        out_specs=pl.BlockSpec((tb, act_p), lambda i: (i, 0)),
        compiler_params=pltpu.CompilerParams(
            dimension_semantics=("parallel",)),
    )(x_pad, *weights)
    return out[:b, :n_actions]


# ---------------------------------------------------------------------------
# Parameter init mirroring the PyTorch module, stored (in, out).  Hidden /
# action dims are zero-padded to 128 lanes; the obs dim is left unpadded.
# fx = x/5 is folded into w1.  Plain Linear weights in bf16; NoisyLinear base
# weights/sigmas in f32 (combined in f32 per forward, then cast to bf16).
# ---------------------------------------------------------------------------
def init_params(key, obs_dim, n_actions, sigma_init=0.017):
    h1, h2, h3, hid = 64, 32, 32, 512
    h1_p, h2_p, h3_p = _round_up(h1, LANE), _round_up(h2, LANE), _round_up(h3, LANE)
    act_p = _round_up(n_actions, LANE)

    keys = jax.random.split(key, 10)
    ki = 0

    def uniform(k, shape, bound):
        return jax.random.uniform(k, shape, jnp.float32, -bound, bound)

    def pad2(a, rows, cols):
        return jnp.zeros((rows, cols), a.dtype).at[:a.shape[0], :a.shape[1]].set(a)

    params = {}
    # "conv" MLP: Linear(obs,64), Linear(64,32), Linear(32,32)
    dims = [(obs_dim, h1, obs_dim, h1_p),     # obs dim NOT padded
            (h1, h2, h1_p, h2_p),
            (h2, h3, h2_p, h3_p)]
    for idx, (fin, fout, fin_p, fout_p) in enumerate(dims, start=1):
        bound = 1.0 / math.sqrt(fin)
        w = uniform(keys[ki], (fin, fout), bound); ki += 1
        bb = uniform(keys[ki], (1, fout), bound); ki += 1
        if idx == 1:
            w = w * (1.0 / 5.0)                # fold fx = x/5 into the first layer
        params[f"w{idx}"] = pad2(w, fin_p, fout_p).astype(jnp.bfloat16)
        params[f"b{idx}"] = pad2(bb, 1, fout_p)

    # NoisyLinear(32, 512) and NoisyLinear(512, n_actions)
    for idx, fin, fout, fin_p, fout_p in ((4, h3, hid, h3_p, hid),
                                          (5, hid, n_actions, hid, act_p)):
        std = math.sqrt(3.0 / fin)
        w = uniform(keys[ki], (fin, fout), std); ki += 1
        bb = uniform(keys[ki], (1, fout), std); ki += 1
        params[f"w{idx}"] = pad2(w, fin_p, fout_p)
        params[f"b{idx}"] = pad2(bb, 1, fout_p)
        params[f"s{idx}w"] = pad2(jnp.full((fin, fout), sigma_init, jnp.float32),
                                  fin_p, fout_p)
        params[f"s{idx}b"] = pad2(jnp.full((1, fout), sigma_init, jnp.float32),
                                  1, fout_p)
    return params


# ---------------------------------------------------------------------------
# Pure-JAX replay of the kernel math (same bf16/f32 ops) for the self-check.
# ---------------------------------------------------------------------------
def _reference_forward(x, params, w4e, b4e, w5e, b5e, n_actions):
    def dense(h, w, b, relu=True):
        y = jnp.dot(h.astype(jnp.bfloat16), w,
                    preferred_element_type=jnp.float32) + b
        return jnp.maximum(y, 0.0) if relu else y

    h = x.astype(jnp.float32)
    h = dense(h, params["w1"], params["b1"])
    h = dense(h, params["w2"], params["b2"])
    h = dense(h, params["w3"], params["b3"])
    h = dense(h, w4e, b4e)
    return dense(h, w5e, b5e, relu=False)[:, :n_actions]


if __name__ == "__main__":
    obs_dim, n_actions, batch = 8, 4, 2
    root = jax.random.PRNGKey(0)
    k_param, k_x, k_noise = jax.random.split(root, 3)

    params = init_params(k_param, obs_dim, n_actions)
    x = jax.random.normal(k_x, (batch, obs_dim), jnp.float32)

    fwd = jax.jit(noisy_dqn_forward, static_argnames=("n_actions", "batch_tile"))
    q = fwd(x, params, n_actions=n_actions, noise_key=k_noise)
    jax.block_until_ready(q)
    assert q.shape == (batch, n_actions)

    # The noise is deterministic given `noise_key`, so rebuild the effective
    # weights and replay the identical math in pure JAX.
    w4e, b4e, w5e, b5e = _effective_noisy_weights(params, k_noise)
    ref = _reference_forward(x, params, w4e, b4e, w5e, b5e, n_actions)

    assert jnp.allclose(q, ref, atol=2e-2, rtol=2e-2), (q, ref)
    print("KERNEL_OK")
</pallas_src>

<mosaic_0001>
module attributes {stable_mosaic.version = 11 : i64} {
  func.func @_noisy_dqn_kernel(%arg0: i32, %arg1: memref<8x8xf32, #tpu.memory_space<vmem>>, %arg2: memref<8x128xbf16, #tpu.memory_space<vmem>>, %arg3: memref<1x128xf32, #tpu.memory_space<vmem>>, %arg4: memref<128x128xbf16, #tpu.memory_space<vmem>>, %arg5: memref<1x128xf32, #tpu.memory_space<vmem>>, %arg6: memref<128x128xbf16, #tpu.memory_space<vmem>>, %arg7: memref<1x128xf32, #tpu.memory_space<vmem>>, %arg8: memref<128x512xbf16, #tpu.memory_space<vmem>>, %arg9: memref<1x512xf32, #tpu.memory_space<vmem>>, %arg10: memref<512x128xbf16, #tpu.memory_space<vmem>>, %arg11: memref<1x128xf32, #tpu.memory_space<vmem>>, %arg12: memref<8x128xf32, #tpu.memory_space<vmem>>) attributes {dimension_semantics = [#tpu.dimension_semantics<parallel>], iteration_bounds = array<i64: 1>, scalar_prefetch = 0 : i64, scratch_operands = 0 : i64, tpu.core_type = #tpu.core_type<tc>, window_params = [{transform_indices = @transform_0, window_bounds = array<i64: 8, 8>}, {pipeline_mode = #tpu.pipeline_mode<synchronous>, transform_indices = @transform_1, window_bounds = array<i64: 8, 128>}, {pipeline_mode = #tpu.pipeline_mode<synchronous>, transform_indices = @transform_2, window_bounds = array<i64: 1, 128>}, {pipeline_mode = #tpu.pipeline_mode<synchronous>, transform_indices = @transform_3, window_bounds = array<i64: 128, 128>}, {pipeline_mode = #tpu.pipeline_mode<synchronous>, transform_indices = @transform_4, window_bounds = array<i64: 1, 128>}, {pipeline_mode = #tpu.pipeline_mode<synchronous>, transform_indices = @transform_5, window_bounds = array<i64: 128, 128>}, {pipeline_mode = #tpu.pipeline_mode<synchronous>, transform_indices = @transform_6, window_bounds = array<i64: 1, 128>}, {pipeline_mode = #tpu.pipeline_mode<synchronous>, transform_indices = @transform_7, window_bounds = array<i64: 128, 512>}, {pipeline_mode = #tpu.pipeline_mode<synchronous>, transform_indices = @transform_8, window_bounds = array<i64: 1, 512>}, {pipeline_mode = #tpu.pipeline_mode<synchronous>, transform_indices = @transform_9, window_bounds = array<i64: 512, 128>}, {pipeline_mode = #tpu.pipeline_mode<synchronous>, transform_indices = @transform_10, window_bounds = array<i64: 1, 128>}, {transform_indices = @transform_11, window_bounds = array<i64: 8, 128>}]} {
    %c0 = arith.constant 0 : index
    %c0_0 = arith.constant 0 : index
    %0 = vector.load %arg1[%c0, %c0_0] : memref<8x8xf32, #tpu.memory_space<vmem>>, vector<8x8xf32>
    %1 = arith.truncf %0 : vector<8x8xf32> to vector<8x8xbf16>
    %c0_1 = arith.constant 0 : index
    %c0_2 = arith.constant 0 : index
    %2 = vector.load %arg2[%c0_1, %c0_2] : memref<8x128xbf16, #tpu.memory_space<vmem>>, vector<8x128xbf16>
    %cst = arith.constant dense<0.000000e+00> : vector<8x128xf32>
    %3 = tpu.matmul %1, %2, %cst {dimension_numbers = #tpu.dot_dimension_numbers<[1], [0], [0], [1], [0, 0, 1, 1], [], []>} : vector<8x8xbf16>, vector<8x128xbf16>, vector<8x128xf32> -> vector<8x128xf32>
    %c0_3 = arith.constant 0 : index
    %c0_4 = arith.constant 0 : index
    %4 = vector.load %arg3[%c0_3, %c0_4] : memref<1x128xf32, #tpu.memory_space<vmem>>, vector<1x128xf32>
    %5 = vector.broadcast %4 : vector<1x128xf32> to vector<8x128xf32>
    %6 = arith.addf %3, %5 : vector<8x128xf32>
    %cst_5 = arith.constant 0.000000e+00 : f32
    %7 = vector.broadcast %cst_5 : f32 to vector<8x128xf32>
    %8 = arith.maximumf %6, %7 : vector<8x128xf32>
    %9 = arith.truncf %8 : vector<8x128xf32> to vector<8x128xbf16>
    %c0_6 = arith.constant 0 : index
    %c0_7 = arith.constant 0 : index
    %10 = vector.load %arg4[%c0_6, %c0_7] : memref<128x128xbf16, #tpu.memory_space<vmem>>, vector<128x128xbf16>
    %cst_8 = arith.constant dense<0.000000e+00> : vector<8x128xf32>
    %11 = tpu.matmul %9, %10, %cst_8 {dimension_numbers = #tpu.dot_dimension_numbers<[1], [0], [0], [1], [0, 0, 1, 1], [], []>} : vector<8x128xbf16>, vector<128x128xbf16>, vector<8x128xf32> -> vector<8x128xf32>
    %c0_9 = arith.constant 0 : index
    %c0_10 = arith.constant 0 : index
    %12 = vector.load %arg5[%c0_9, %c0_10] : memref<1x128xf32, #tpu.memory_space<vmem>>, vector<1x128xf32>
    %13 = vector.broadcast %12 : vector<1x128xf32> to vector<8x128xf32>
    %14 = arith.addf %11, %13 : vector<8x128xf32>
    %cst_11 = arith.constant 0.000000e+00 : f32
    %15 = vector.broadcast %cst_11 : f32 to vector<8x128xf32>
    %16 = arith.maximumf %14, %15 : vector<8x128xf32>
    %17 = arith.truncf %16 : vector<8x128xf32> to vector<8x128xbf16>
    %c0_12 = arith.constant 0 : index
    %c0_13 = arith.constant 0 : index
    %18 = vector.load %arg6[%c0_12, %c0_13] : memref<128x128xbf16, #tpu.memory_space<vmem>>, vector<128x128xbf16>
    %cst_14 = arith.constant dense<0.000000e+00> : vector<8x128xf32>
    %19 = tpu.matmul %17, %18, %cst_14 {dimension_numbers = #tpu.dot_dimension_numbers<[1], [0], [0], [1], [0, 0, 1, 1], [], []>} : vector<8x128xbf16>, vector<128x128xbf16>, vector<8x128xf32> -> vector<8x128xf32>
    %c0_15 = arith.constant 0 : index
    %c0_16 = arith.constant 0 : index
    %20 = vector.load %arg7[%c0_15, %c0_16] : memref<1x128xf32, #tpu.memory_space<vmem>>, vector<1x128xf32>
    %21 = vector.broadcast %20 : vector<1x128xf32> to vector<8x128xf32>
    %22 = arith.addf %19, %21 : vector<8x128xf32>
    %cst_17 = arith.constant 0.000000e+00 : f32
    %23 = vector.broadcast %cst_17 : f32 to vector<8x128xf32>
    %24 = arith.maximumf %22, %23 : vector<8x128xf32>
    %25 = arith.truncf %24 : vector<8x128xf32> to vector<8x128xbf16>
    %c0_18 = arith.constant 0 : index
    %c0_19 = arith.constant 0 : index
    %26 = vector.load %arg8[%c0_18, %c0_19] : memref<128x512xbf16, #tpu.memory_space<vmem>>, vector<128x512xbf16>
    %cst_20 = arith.constant dense<0.000000e+00> : vector<8x512xf32>
    %27 = tpu.matmul %25, %26, %cst_20 {dimension_numbers = #tpu.dot_dimension_numbers<[1], [0], [0], [1], [0, 0, 1, 1], [], []>} : vector<8x128xbf16>, vector<128x512xbf16>, vector<8x512xf32> -> vector<8x512xf32>
    %c0_21 = arith.constant 0 : index
    %c0_22 = arith.constant 0 : index
    %28 = vector.load %arg9[%c0_21, %c0_22] : memref<1x512xf32, #tpu.memory_space<vmem>>, vector<1x512xf32>
    %29 = vector.broadcast %28 : vector<1x512xf32> to vector<8x512xf32>
    %30 = arith.addf %27, %29 : vector<8x512xf32>
    %cst_23 = arith.constant 0.000000e+00 : f32
    %31 = vector.broadcast %cst_23 : f32 to vector<8x512xf32>
    %32 = arith.maximumf %30, %31 : vector<8x512xf32>
    %33 = arith.truncf %32 : vector<8x512xf32> to vector<8x512xbf16>
    %c0_24 = arith.constant 0 : index
    %c0_25 = arith.constant 0 : index
    %34 = vector.load %arg10[%c0_24, %c0_25] : memref<512x128xbf16, #tpu.memory_space<vmem>>, vector<512x128xbf16>
    %cst_26 = arith.constant dense<0.000000e+00> : vector<8x128xf32>
    %35 = tpu.matmul %33, %34, %cst_26 {dimension_numbers = #tpu.dot_dimension_numbers<[1], [0], [0], [1], [0, 0, 1, 1], [], []>} : vector<8x512xbf16>, vector<512x128xbf16>, vector<8x128xf32> -> vector<8x128xf32>
    %c0_27 = arith.constant 0 : index
    %c0_28 = arith.constant 0 : index
    %36 = vector.load %arg11[%c0_27, %c0_28] : memref<1x128xf32, #tpu.memory_space<vmem>>, vector<1x128xf32>
    %37 = vector.broadcast %36 : vector<1x128xf32> to vector<8x128xf32>
    %38 = arith.addf %35, %37 : vector<8x128xf32>
    %c0_29 = arith.constant 0 : index
    %c0_30 = arith.constant 0 : index
    %39 = vector.load %arg12[%c0_29, %c0_30] : memref<8x128xf32, #tpu.memory_space<vmem>>, vector<8x128xf32>
    tpu.vector_store %arg12[%c0_29, %c0_30], %38 {strides = array<i32>} : memref<8x128xf32, #tpu.memory_space<vmem>>, vector<8x128xf32>,
    return
  }
  func.func @transform_0(%arg0: i32) -> (i32, i32) {
    %c0_i32 = arith.constant 0 : i32
    %c0_i32_0 = arith.constant 0 : i32
    return %arg0, %c0_i32 : i32, i32
  }
  func.func @transform_1(%arg0: i32) -> (i32, i32) {
    %c0_i32 = arith.constant 0 : i32
    %c0_i32_0 = arith.constant 0 : i32
    %c0_i32_1 = arith.constant 0 : i32
    return %c0_i32, %c0_i32_0 : i32, i32
  }
  func.func @transform_2(%arg0: i32) -> (i32, i32) {
    %c0_i32 = arith.constant 0 : i32
    %c0_i32_0 = arith.constant 0 : i32
    %c0_i32_1 = arith.constant 0 : i32
    return %c0_i32, %c0_i32_0 : i32, i32
  }
  func.func @transform_3(%arg0: i32) -> (i32, i32) {
    %c0_i32 = arith.constant 0 : i32
    %c0_i32_0 = arith.constant 0 : i32
    %c0_i32_1 = arith.constant 0 : i32
    return %c0_i32, %c0_i32_0 : i32, i32
  }
  func.func @transform_4(%arg0: i32) -> (i32, i32) {
    %c0_i32 = arith.constant 0 : i32
    %c0_i32_0 = arith.constant 0 : i32
    %c0_i32_1 = arith.constant 0 : i32
    return %c0_i32, %c0_i32_0 : i32, i32
  }
  func.func @transform_5(%arg0: i32) -> (i32, i32) {
    %c0_i32 = arith.constant 0 : i32
    %c0_i32_0 = arith.constant 0 : i32
    %c0_i32_1 = arith.constant 0 : i32
    return %c0_i32, %c0_i32_0 : i32, i32
  }
  func.func @transform_6(%arg0: i32) -> (i32, i32) {
    %c0_i32 = arith.constant 0 : i32
    %c0_i32_0 = arith.constant 0 : i32
    %c0_i32_1 = arith.constant 0 : i32
    return %c0_i32, %c0_i32_0 : i32, i32
  }
  func.func @transform_7(%arg0: i32) -> (i32, i32) {
    %c0_i32 = arith.constant 0 : i32
    %c0_i32_0 = arith.constant 0 : i32
    %c0_i32_1 = arith.constant 0 : i32
    return %c0_i32, %c0_i32_0 : i32, i32
  }
  func.func @transform_8(%arg0: i32) -> (i32, i32) {
    %c0_i32 = arith.constant 0 : i32
    %c0_i32_0 = arith.constant 0 : i32
    %c0_i32_1 = arith.constant 0 : i32
    return %c0_i32, %c0_i32_0 : i32, i32
  }
  func.func @transform_9(%arg0: i32) -> (i32, i32) {
    %c0_i32 = arith.constant 0 : i32
    %c0_i32_0 = arith.constant 0 : i32
    %c0_i32_1 = arith.constant 0 : i32
    return %c0_i32, %c0_i32_0 : i32, i32
  }
  func.func @transform_10(%arg0: i32) -> (i32, i32) {
    %c0_i32 = arith.constant 0 : i32
    %c0_i32_0 = arith.constant 0 : i32
    %c0_i32_1 = arith.constant 0 : i32
    return %c0_i32, %c0_i32_0 : i32, i32
  }
  func.func @transform_11(%arg0: i32) -> (i32, i32) {
    %c0_i32 = arith.constant 0 : i32
    %c0_i32_0 = arith.constant 0 : i32
    return %arg0, %c0_i32 : i32, i32
  }
}

</mosaic_0001>

<llo_original>
// kernel: noisy_dqn_forward.1
$region0: #{noisy_dqn_forward.1}
  #allocation0 [shape = 'u32[]', space=smem, size = 0x4, offset = 0x4, fixed_abs, tag = 'smem constant byte address 0x4 - core index']
  #allocation1 [shape = 'u32[144,128]{1,0:T(1,128)}', space=vmem, size = 0x12000, scoped, tag = 'internal scratch']
  %s0 = inlined_call_operand.vmem [shape: f32[8,8], index: 0, kind: input, shape index: {}]
  %s1 = inlined_call_operand.vmem [shape: bf16[8,128], index: 1, kind: input, shape index: {}]
  %s2 = inlined_call_operand.vmem [shape: f32[1,128], index: 2, kind: input, shape index: {}]
  %s3 = inlined_call_operand.vmem [shape: bf16[128,128], index: 3, kind: input, shape index: {}]
  %s4 = inlined_call_operand.vmem [shape: f32[1,128], index: 4, kind: input, shape index: {}]
  %s5 = inlined_call_operand.vmem [shape: bf16[128,128], index: 5, kind: input, shape index: {}]
  %s6 = inlined_call_operand.vmem [shape: f32[1,128], index: 6, kind: input, shape index: {}]
  %s7 = inlined_call_operand.vmem [shape: bf16[128,512], index: 7, kind: input, shape index: {}]
  %s8 = inlined_call_operand.vmem [shape: f32[1,512], index: 8, kind: input, shape index: {}]
  %s9 = inlined_call_operand.vmem [shape: bf16[512,128], index: 9, kind: input, shape index: {}]
  %s10 = inlined_call_operand.vmem [shape: f32[1,128], index: 10, kind: input, shape index: {}]
  %s11 = inlined_call_operand.vmem [shape: f32[8,128], index: 11, kind: output, shape index: {}]
  %s12 = sld [smem:[#allocation0]]
  $region54: #{noisy_dqn_forward.1} parent=0
    _
  %s14 = ssub.s32 1, %s12
  %s15 = scalar_select 0, %s14, %s12
  // Predicated region
  $region2: #{noisy_dqn_forward.1} parent=0 // pred_check
    _
  $region3: #{noisy_dqn_forward.1} parent=0 // pred_check_branch
    %17 = sbr.rel (0) target = $region5
  $region4: #{noisy_dqn_forward.1} parent=0 // pred_region
    _
  $region5: #{noisy_dqn_forward.1} parent=0 // pred_fallthru
    _
  // Predicated region
  $region6: #{noisy_dqn_forward.1} parent=0 // pred_check
    _
  $region7: #{noisy_dqn_forward.1} parent=0 // pred_check_branch
    %19 = sbr.rel (0) target = $region9
  $region8: #{noisy_dqn_forward.1} parent=0 // pred_region
    _
  $region9: #{noisy_dqn_forward.1} parent=0 // pred_fallthru
    _
  // Predicated region
  $region10: #{noisy_dqn_forward.1} parent=0 // pred_check
    _
  $region11: #{noisy_dqn_forward.1} parent=0 // pred_check_branch
    %21 = sbr.rel (0) target = $region13
  $region12: #{noisy_dqn_forward.1} parent=0 // pred_region
    _
  $region13: #{noisy_dqn_forward.1} parent=0 // pred_fallthru
    _
  // Predicated region
  $region14: #{noisy_dqn_forward.1} parent=0 // pred_check
    _
  $region15: #{noisy_dqn_forward.1} parent=0 // pred_check_branch
    %23 = sbr.rel (0) target = $region17
  $region16: #{noisy_dqn_forward.1} parent=0 // pred_region
    _
  $region17: #{noisy_dqn_forward.1} parent=0 // pred_fallthru
    _
  // Predicated region
  $region18: #{noisy_dqn_forward.1} parent=0 // pred_check
    _
  $region19: #{noisy_dqn_forward.1} parent=0 // pred_check_branch
    %25 = sbr.rel (0) target = $region21
  $region20: #{noisy_dqn_forward.1} parent=0 // pred_region
    _
  $region21: #{noisy_dqn_forward.1} parent=0 // pred_fallthru
    _
  // Predicated region
  $region22: #{noisy_dqn_forward.1} parent=0 // pred_check
    _
  $region23: #{noisy_dqn_forward.1} parent=0 // pred_check_branch
    %27 = sbr.rel (0) target = $region25
  $region24: #{noisy_dqn_forward.1} parent=0 // pred_region
    _
  $region25: #{noisy_dqn_forward.1} parent=0 // pred_fallthru
    _
  // Predicated region
  $region26: #{noisy_dqn_forward.1} parent=0 // pred_check
    _
  $region27: #{noisy_dqn_forward.1} parent=0 // pred_check_branch
    %29 = sbr.rel (0) target = $region29
  $region28: #{noisy_dqn_forward.1} parent=0 // pred_region
    _
  $region29: #{noisy_dqn_forward.1} parent=0 // pred_fallthru
    _
  // Predicated region
  $region30: #{noisy_dqn_forward.1} parent=0 // pred_check
    _
  $region31: #{noisy_dqn_forward.1} parent=0 // pred_check_branch
    %31 = sbr.rel (0) target = $region33
  $region32: #{noisy_dqn_forward.1} parent=0 // pred_region
    _
  $region33: #{noisy_dqn_forward.1} parent=0 // pred_fallthru
    _
  // Predicated region
  $region34: #{noisy_dqn_forward.1} parent=0 // pred_check
    _
  $region35: #{noisy_dqn_forward.1} parent=0 // pred_check_branch
    %33 = sbr.rel (0) target = $region37
  $region36: #{noisy_dqn_forward.1} parent=0 // pred_region
    _
  $region37: #{noisy_dqn_forward.1} parent=0 // pred_fallthru
    _
  // Predicated region
  $region38: #{noisy_dqn_forward.1} parent=0 // pred_check
    _
  $region39: #{noisy_dqn_forward.1} parent=0 // pred_check_branch
    %35 = sbr.rel (0) target = $region41
  $region40: #{noisy_dqn_forward.1} parent=0 // pred_region
    _
  $region41: #{noisy_dqn_forward.1} parent=0 // pred_fallthru
    _
  // Predicated region
  $region42: #{noisy_dqn_forward.1} parent=0 // pred_check
    _
  $region43: #{noisy_dqn_forward.1} parent=0 // pred_check_branch
    %37 = sbr.rel (0) target = $region45
  $region44: #{noisy_dqn_forward.1} parent=0 // pred_region
    _
  $region45: #{noisy_dqn_forward.1} parent=0 // pred_fallthru
    _
  %v39 = vld [vmem:[%s0] sm:$0xff]
  %v40 = vpack.c.bf16 %v39, %v39
  %v41 = vld [vmem:[%s1] sm:$0xf]
  %v42 = vld [vmem:[%s2] sm:$0x1]
  %v44 = vlaneseq
  %v45 = vshrl.u32 %v44, 7
  %v46 = vsub.s32 0, %v45
  %v47 = vrot.slane %v42, %v46
  %vm49 = vcmask 64512
  %v51 = vsel %vm49, %v40, 0
  %vm53 = vcmask 1043456
  %v55 = vsel %vm53, %v41, 0
  %57 = vmatprep.subr.bf16.mxu0 0
  %58 = vmatpush1.bf16.msra.mxu0 %v55
  %59 = vmatprep.subr.bf16.mxu0 0
  %60 = vmatpush1.bf16.msra.mxu0 0
  %61 = vmatprep.subr.bf16.mxu0 0
  %62 = vmatpush1.bf16.msra.mxu0 0
  %63 = vmatprep.subr.bf16.mxu0 0
  %64 = vmatpush1.bf16.msra.mxu0 0
  %65 = vmatprep.subr.bf16.mxu0 0
  %66 = vmatpush1.bf16.msra.mxu0 0
  %67 = vmatprep.subr.bf16.mxu0 0
  %68 = vmatpush1.bf16.msra.mxu0 0
  %69 = vmatprep.subr.bf16.mxu0 0
  %70 = vmatpush1.bf16.msra.mxu0 0
  %71 = vmatprep.subr.bf16.mxu0 0
  %72 = vmatpush1.bf16.msra.mxu0 0
  %73 = vmatprep.subr.bf16.mxu0 0
  %74 = vmatpush1.bf16.msra.mxu0 0
  %75 = vmatprep.subr.bf16.mxu0 0
  %76 = vmatpush1.bf16.msra.mxu0 0
  %77 = vmatprep.subr.bf16.mxu0 0
  %78 = vmatpush1.bf16.msra.mxu0 0
  %79 = vmatprep.subr.bf16.mxu0 0
  %80 = vmatpush1.bf16.msra.mxu0 0
  %81 = vmatprep.subr.bf16.mxu0 0
  %82 = vmatpush1.bf16.msra.mxu0 0
  %83 = vmatprep.subr.bf16.mxu0 0
  %84 = vmatpush1.bf16.msra.mxu0 0
  %85 = vmatprep.subr.bf16.mxu0 0
  %86 = vmatpush1.bf16.msra.mxu0 0
  %87 = vmatprep.subr.bf16.mxu0 0
  %88 = vmatpush1.bf16.msra.mxu0 0
  %89 = vmatprep.mubr.bf16.mxu0 0
  %90 = vmatmul.mubr.bf16.gmra.mrb[0].mxu0 %v51
  %v91 = vpop.f32.mrb[0].mxu0
  %v92 = vadd.f32 %v47, %v91
  %v93 = vpop.f32.mrb[0].mxu0
  %v94 = vpop.f32.mrb[0].mxu0
  %v95 = vpop.f32.mrb[0].mxu0
  %96 = vdwg.mxu0
  %v97 = vmax.f32 %v92, 0.0
  %v98 = vpack.c.bf16 %v97, %v97
  %v99 = vld [vmem:[%s3] sm:$0xf]
  %v100 = vld [vmem:[%s3 + $0x4] sm:$0xf]
  %v101 = vld [vmem:[%s3 + $0x8] sm:$0xf]
  %v102 = vld [vmem:[%s3 + $0xc] sm:$0xf]
  %v103 = vld [vmem:[%s3 + $0x10] sm:$0xf]
  %v104 = vld [vmem:[%s3 + $0x14] sm:$0xf]
  %v105 = vld [vmem:[%s3 + $0x18] sm:$0xf]
  %v106 = vld [vmem:[%s3 + $0x1c] sm:$0xf]
  %v107 = vld [vmem:[%s3 + $0x20] sm:$0xf]
  %v108 = vld [vmem:[%s3 + $0x24] sm:$0xf]
  %v109 = vld [vmem:[%s3 + $0x28] sm:$0xf]
  %v110 = vld [vmem:[%s3 + $0x2c] sm:$0xf]
  %v111 = vld [vmem:[%s3 + $0x30] sm:$0xf]
  %v112 = vld [vmem:[%s3 + $0x34] sm:$0xf]
  %v113 = vld [vmem:[%s3 + $0x38] sm:$0xf]
  %v114 = vld [vmem:[%s3 + $0x3c] sm:$0xf]
  %v115 = vld [vmem:[%s4] sm:$0x1]
  %v117 = vlaneseq
  %v118 = vshrl.u32 %v117, 7
  %v119 = vsub.s32 0, %v118
  %v120 = vrot.slane %v115, %v119
  %v138 = vunpack.c.l.b16 %v99
  %v139 = vunpack.c.l.b16 %v100
  %v140 = vunpack.c.l.b16 %v101
  %v141 = vunpack.c.l.b16 %v102
  %v142 = vunpack.c.l.b16 %v103
  %v143 = vunpack.c.l.b16 %v104
  %v144 = vunpack.c.l.b16 %v105
  %v145 = vunpack.c.l.b16 %v106
  %v146 = vunpack.c.l.b16 %v107
  %v147 = vunpack.c.l.b16 %v108
  %v148 = vunpack.c.l.b16 %v109
  %v149 = vunpack.c.l.b16 %v110
  %v150 = vunpack.c.l.b16 %v111
  %v151 = vunpack.c.l.b16 %v112
  %v152 = vunpack.c.l.b16 %v113
  %v153 = vunpack.c.l.b16 %v114
  %v154 = vpack.c.b16 %v139, %v138
  %v155 = vpack.c.b16 %v141, %v140
  %v156 = vpack.c.b16 %v143, %v142
  %v157 = vpack.c.b16 %v145, %v144
  %v158 = vpack.c.b16 %v147, %v146
  %v159 = vpack.c.b16 %v149, %v148
  %v160 = vpack.c.b16 %v151, %v150
  %v161 = vpack.c.b16 %v153, %v152
  %170 = vmatprep.subr.bf16.mxu0 0
  %171 = vmatpush1.bf16.msra.mxu0 %v154
  %172 = vmatprep.subr.bf16.mxu0 0
  %173 = vmatpush1.bf16.msra.mxu0 %v155
  %174 = vmatprep.subr.bf16.mxu0 0
  %175 = vmatpush1.bf16.msra.mxu0 %v156
  %176 = vmatprep.subr.bf16.mxu0 0
  %177 = vmatpush1.bf16.msra.mxu0 %v157
  %178 = vmatprep.subr.bf16.mxu0 0
  %179 = vmatpush1.bf16.msra.mxu0 %v158
  %180 = vmatprep.subr.bf16.mxu0 0
  %181 = vmatpush1.bf16.msra.mxu0 %v159
  %182 = vmatprep.subr.bf16.mxu0 0
  %183 = vmatpush1.bf16.msra.mxu0 %v160
  %184 = vmatprep.subr.bf16.mxu0 0
  %185 = vmatpush1.bf16.msra.mxu0 %v161
  %186 = vmatprep.subr.bf16.mxu0 0
  %187 = vmatpush1.bf16.msra.mxu0 0
  %188 = vmatprep.subr.bf16.mxu0 0
  %189 = vmatpush1.bf16.msra.mxu0 0
  %190 = vmatprep.subr.bf16.mxu0 0
  %191 = vmatpush1.bf16.msra.mxu0 0
  %192 = vmatprep.subr.bf16.mxu0 0
  %193 = vmatpush1.bf16.msra.mxu0 0
  %194 = vmatprep.subr.bf16.mxu0 0
  %195 = vmatpush1.bf16.msra.mxu0 0
  %196 = vmatprep.subr.bf16.mxu0 0
  %197 = vmatpush1.bf16.msra.mxu0 0
  %198 = vmatprep.subr.bf16.mxu0 0
  %199 = vmatpush1.bf16.msra.mxu0 0
  %200 = vmatprep.subr.bf16.mxu0 0
  %201 = vmatpush1.bf16.msra.mxu0 0
  %202 = vmatprep.mubr.bf16.mxu0 0
  %203 = vmatmul.mubr.bf16.gmra.mrb[0].mxu0 %v98
  %v204 = vpop.f32.mrb[0].mxu0
  %v205 = vadd.f32 %v120, %v204
  %v206 = vpop.f32.mrb[0].mxu0
  %v207 = vpop.f32.mrb[0].mxu0
  %v208 = vpop.f32.mrb[0].mxu0
  %209 = vdwg.mxu0
  %v210 = vmax.f32 %v205, 0.0
  %v211 = vpack.c.bf16 %v210, %v210
  %v212 = vld [vmem:[%s5] sm:$0xf]
  %v213 = vld [vmem:[%s5 + $0x4] sm:$0xf]
  %v214 = vld [vmem:[%s5 + $0x8] sm:$0xf]
  %v215 = vld [vmem:[%s5 + $0xc] sm:$0xf]
  %v216 = vld [vmem:[%s5 + $0x10] sm:$0xf]
  %v217 = vld [vmem:[%s5 + $0x14] sm:$0xf]
  %v218 = vld [vmem:[%s5 + $0x18] sm:$0xf]
  %v219 = vld [vmem:[%s5 + $0x1c] sm:$0xf]
  %v220 = vld [vmem:[%s5 + $0x20] sm:$0xf]
  %v221 = vld [vmem:[%s5 + $0x24] sm:$0xf]
  %v222 = vld [vmem:[%s5 + $0x28] sm:$0xf]
  %v223 = vld [vmem:[%s5 + $0x2c] sm:$0xf]
  %v224 = vld [vmem:[%s5 + $0x30] sm:$0xf]
  %v225 = vld [vmem:[%s5 + $0x34] sm:$0xf]
  %v226 = vld [vmem:[%s5 + $0x38] sm:$0xf]
  %v227 = vld [vmem:[%s5 + $0x3c] sm:$0xf]
  %v228 = vld [vmem:[%s6] sm:$0x1]
  %v230 = vlaneseq
  %v231 = vshrl.u32 %v230, 7
  %v232 = vsub.s32 0, %v231
  %v233 = vrot.slane %v228, %v232
  %v251 = vunpack.c.l.b16 %v212
  %v252 = vunpack.c.l.b16 %v213
  %v253 = vunpack.c.l.b16 %v214
  %v254 = vunpack.c.l.b16 %v215
  %v255 = vunpack.c.l.b16 %v216
  %v256 = vunpack.c.l.b16 %v217
  %v257 = vunpack.c.l.b16 %v218
  %v258 = vunpack.c.l.b16 %v219
  %v259 = vunpack.c.l.b16 %v220
  %v260 = vunpack.c.l.b16 %v221
  %v261 = vunpack.c.l.b16 %v222
  %v262 = vunpack.c.l.b16 %v223
  %v263 = vunpack.c.l.b16 %v224
  %v264 = vunpack.c.l.b16 %v225
  %v265 = vunpack.c.l.b16 %v226
  %v266 = vunpack.c.l.b16 %v227
  %v267 = vpack.c.b16 %v252, %v251
  %v268 = vpack.c.b16 %v254, %v253
  %v269 = vpack.c.b16 %v256, %v255
  %v270 = vpack.c.b16 %v258, %v257
  %v271 = vpack.c.b16 %v260, %v259
  %v272 = vpack.c.b16 %v262, %v261
  %v273 = vpack.c.b16 %v264, %v263
  %v274 = vpack.c.b16 %v266, %v265
  %283 = vmatprep.subr.bf16.mxu0 0
  %284 = vmatpush1.bf16.msra.mxu0 %v267
  %285 = vmatprep.subr.bf16.mxu0 0
  %286 = vmatpush1.bf16.msra.mxu0 %v268
  %287 = vmatprep.subr.bf16.mxu0 0
  %288 = vmatpush1.bf16.msra.mxu0 %v269
  %289 = vmatprep.subr.bf16.mxu0 0
  %290 = vmatpush1.bf16.msra.mxu0 %v270
  %291 = vmatprep.subr.bf16.mxu0 0
  %292 = vmatpush1.bf16.msra.mxu0 %v271
  %293 = vmatprep.subr.bf16.mxu0 0
  %294 = vmatpush1.bf16.msra.mxu0 %v272
  %295 = vmatprep.subr.bf16.mxu0 0
  %296 = vmatpush1.bf16.msra.mxu0 %v273
  %297 = vmatprep.subr.bf16.mxu0 0
  %298 = vmatpush1.bf16.msra.mxu0 %v274
  %299 = vmatprep.subr.bf16.mxu0 0
  %300 = vmatpush1.bf16.msra.mxu0 0
  %301 = vmatprep.subr.bf16.mxu0 0
  %302 = vmatpush1.bf16.msra.mxu0 0
  %303 = vmatprep.subr.bf16.mxu0 0
  %304 = vmatpush1.bf16.msra.mxu0 0
  %305 = vmatprep.subr.bf16.mxu0 0
  %306 = vmatpush1.bf16.msra.mxu0 0
  %307 = vmatprep.subr.bf16.mxu0 0
  %308 = vmatpush1.bf16.msra.mxu0 0
  %309 = vmatprep.subr.bf16.mxu0 0
  %310 = vmatpush1.bf16.msra.mxu0 0
  %311 = vmatprep.subr.bf16.mxu0 0
  %312 = vmatpush1.bf16.msra.mxu0 0
  %313 = vmatprep.subr.bf16.mxu0 0
  %314 = vmatpush1.bf16.msra.mxu0 0
  %315 = vmatprep.mubr.bf16.mxu0 0
  %316 = vmatmul.mubr.bf16.gmra.mrb[0].mxu0 %v211
  %v317 = vpop.f32.mrb[0].mxu0
  %v318 = vadd.f32 %v233, %v317
  %v319 = vpop.f32.mrb[0].mxu0
  %v320 = vpop.f32.mrb[0].mxu0
  %v321 = vpop.f32.mrb[0].mxu0
  %322 = vdwg.mxu0
  %v323 = vmax.f32 %v318, 0.0
  %v324 = vpack.c.bf16 %v323, %v323
  %v325 = vld [vmem:[%s7] sm:$0xff]
  %v326 = vld [vmem:[%s7 + $0x8] sm:$0xff]
  %v327 = vld [vmem:[%s7 + $0x10] sm:$0xff]
  %v328 = vld [vmem:[%s7 + $0x18] sm:$0xff]
  %v329 = vld [vmem:[%s7 + $0x20] sm:$0xff]
  %v330 = vld [vmem:[%s7 + $0x28] sm:$0xff]
  %v331 = vld [vmem:[%s7 + $0x30] sm:$0xff]
  %v332 = vld [vmem:[%s7 + $0x38] sm:$0xff]
  %v333 = vld [vmem:[%s7 + $0x40] sm:$0xff]
  %v334 = vld [vmem:[%s7 + $0x48] sm:$0xff]
  %v335 = vld [vmem:[%s7 + $0x50] sm:$0xff]
  %v336 = vld [vmem:[%s7 + $0x58] sm:$0xff]
  %v337 = vld [vmem:[%s7 + $0x60] sm:$0xff]
  %v338 = vld [vmem:[%s7 + $0x68] sm:$0xff]
  %v339 = vld [vmem:[%s7 + $0x70] sm:$0xff]
  %v340 = vld [vmem:[%s7 + $0x78] sm:$0xff]
  %v341 = vld [vmem:[%s7 + $0x80] sm:$0xff]
  %v342 = vld [vmem:[%s7 + $0x88] sm:$0xff]
  %v343 = vld [vmem:[%s7 + $0x90] sm:$0xff]
  %v344 = vld [vmem:[%s7 + $0x98] sm:$0xff]
  %v345 = vld [vmem:[%s7 + $0xa0] sm:$0xff]
  %v346 = vld [vmem:[%s7 + $0xa8] sm:$0xff]
  %v347 = vld [vmem:[%s7 + $0xb0] sm:$0xff]
  %v348 = vld [vmem:[%s7 + $0xb8] sm:$0xff]
  %v349 = vld [vmem:[%s7 + $0xc0] sm:$0xff]
  %v350 = vld [vmem:[%s7 + $0xc8] sm:$0xff]
  %v351 = vld [vmem:[%s7 + $0xd0] sm:$0xff]
  %v352 = vld [vmem:[%s7 + $0xd8] sm:$0xff]
  %v353 = vld [vmem:[%s7 + $0xe0] sm:$0xff]
  %v354 = vld [vmem:[%s7 + $0xe8] sm:$0xff]
  %v355 = vld [vmem:[%s7 + $0xf0] sm:$0xff]
  %v356 = vld [vmem:[%s7 + $0xf8] sm:$0xff]
  %v357 = vld [vmem:[%s8] sm:$0xf]
  %v359 = vlaneseq
  %v360 = vshrl.u32 %v359, 7
  %v361 = vsub.s32 0, %v360
  %v362 = vrot.slane %v357, %v361
  %v363 = vlaneseq
  %v364 = vshrl.u32 %v363, 7
  %v365 = vsub.s32 1, %v364
  %v366 = vrot.slane %v357, %v365
  %v367 = vlaneseq
  %v368 = vshrl.u32 %v367, 7
  %v369 = vsub.s32 2, %v368
  %v370 = vrot.slane %v357, %v369
  %v371 = vlaneseq
  %v372 = vshrl.u32 %v371, 7
  %v373 = vsub.s32 3, %v372
  %v374 = vrot.slane %v357, %v373
  %v411 = vunpack.c.l.b16 %v325
  %v412 = vunpack.c.h.b16 %v325
  %v413 = vunpack.c.l.b16 %v326
  %v414 = vunpack.c.h.b16 %v326
  %v415 = vunpack.c.l.b16 %v327
  %v416 = vunpack.c.h.b16 %v327
  %v417 = vunpack.c.l.b16 %v328
  %v418 = vunpack.c.h.b16 %v328
  %v419 = vunpack.c.l.b16 %v329
  %v420 = vunpack.c.h.b16 %v329
  %v421 = vunpack.c.l.b16 %v330
  %v422 = vunpack.c.h.b16 %v330
  %v423 = vunpack.c.l.b16 %v331
  %v424 = vunpack.c.h.b16 %v331
  %v425 = vunpack.c.l.b16 %v332
  %v426 = vunpack.c.h.b16 %v332
  %v427 = vunpack.c.l.b16 %v333
  %v428 = vunpack.c.h.b16 %v333
  %v429 = vunpack.c.l.b16 %v334
  %v430 = vunpack.c.h.b16 %v334
  %v431 = vunpack.c.l.b16 %v335
  %v432 = vunpack.c.h.b16 %v335
  %v433 = vunpack.c.l.b16 %v336
  %v434 = vunpack.c.h.b16 %v336
  %v435 = vunpack.c.l.b16 %v337
  %v436 = vunpack.c.h.b16 %v337
  %v437 = vunpack.c.l.b16 %v338
  %v438 = vunpack.c.h.b16 %v338
  %v439 = vunpack.c.l.b16 %v339
  %v440 = vunpack.c.h.b16 %v339
  %v441 = vunpack.c.l.b16 %v340
  %v442 = vunpack.c.h.b16 %v340
  %v443 = vunpack.c.l.b16 %v341
  %v444 = vunpack.c.h.b16 %v341
  %v445 = vunpack.c.l.b16 %v342
  %v446 = vunpack.c.h.b16 %v342
  %v447 = vunpack.c.l.b16 %v343
  %v448 = vunpack.c.h.b16 %v343
  %v449 = vunpack.c.l.b16 %v344
  %v450 = vunpack.c.h.b16 %v344
  %v451 = vunpack.c.l.b16 %v345
  %v452 = vunpack.c.h.b16 %v345
  %v453 = vunpack.c.l.b16 %v346
  %v454 = vunpack.c.h.b16 %v346
  %v455 = vunpack.c.l.b16 %v347
  %v456 = vunpack.c.h.b16 %v347
  %v457 = vunpack.c.l.b16 %v348
  %v458 = vunpack.c.h.b16 %v348
  %v459 = vunpack.c.l.b16 %v349
  %v460 = vunpack.c.h.b16 %v349
  %v461 = vunpack.c.l.b16 %v350
  %v462 = vunpack.c.h.b16 %v350
  %v463 = vunpack.c.l.b16 %v351
  %v464 = vunpack.c.h.b16 %v351
  %v465 = vunpack.c.l.b16 %v352
  %v466 = vunpack.c.h.b16 %v352
  %v467 = vunpack.c.l.b16 %v353
  %v468 = vunpack.c.h.b16 %v353
  %v469 = vunpack.c.l.b16 %v354
  %v470 = vunpack.c.h.b16 %v354
  %v471 = vunpack.c.l.b16 %v355
  %v472 = vunpack.c.h.b16 %v355
  %v473 = vunpack.c.l.b16 %v356
  %v474 = vunpack.c.h.b16 %v356
  %v475 = vpack.c.b16 %v415, %v411
  %v476 = vpack.c.b16 %v416, %v412
  %v477 = vpack.c.b16 %v417, %v413
  %v478 = vpack.c.b16 %v418, %v414
  %v479 = vpack.c.b16 %v423, %v419
  %v480 = vpack.c.b16 %v424, %v420
  %v481 = vpack.c.b16 %v425, %v421
  %v482 = vpack.c.b16 %v426, %v422
  %v483 = vpack.c.b16 %v431, %v427
  %v484 = vpack.c.b16 %v432, %v428
  %v485 = vpack.c.b16 %v433, %v429
  %v486 = vpack.c.b16 %v434, %v430
  %v487 = vpack.c.b16 %v439, %v435
  %v488 = vpack.c.b16 %v440, %v436
  %v489 = vpack.c.b16 %v441, %v437
  %v490 = vpack.c.b16 %v442, %v438
  %v491 = vpack.c.b16 %v447, %v443
  %v492 = vpack.c.b16 %v448, %v444
  %v493 = vpack.c.b16 %v449, %v445
  %v494 = vpack.c.b16 %v450, %v446
  %v495 = vpack.c.b16 %v455, %v451
  %v496 = vpack.c.b16 %v456, %v452
  %v497 = vpack.c.b16 %v457, %v453
  %v498 = vpack.c.b16 %v458, %v454
  %v499 = vpack.c.b16 %v463, %v459
  %v500 = vpack.c.b16 %v464, %v460
  %v501 = vpack.c.b16 %v465, %v461
  %v502 = vpack.c.b16 %v466, %v462
  %v503 = vpack.c.b16 %v471, %v467
  %v504 = vpack.c.b16 %v472, %v468
  %v505 = vpack.c.b16 %v473, %v469
  %v506 = vpack.c.b16 %v474, %v470
  %539 = vmatprep.subr.bf16.mxu0 %v476
  %540 = vmatpush1.bf16.msra.mxu0 %v475
  %541 = vmatprep.subr.bf16.mxu0 %v480
  %542 = vmatpush1.bf16.msra.mxu0 %v479
  %543 = vmatprep.subr.bf16.mxu0 %v484
  %544 = vmatpush1.bf16.msra.mxu0 %v483
  %545 = vmatprep.subr.bf16.mxu0 %v488
  %546 = vmatpush1.bf16.msra.mxu0 %v487
  %547 = vmatprep.subr.bf16.mxu0 %v492
  %548 = vmatpush1.bf16.msra.mxu0 %v491
  %549 = vmatprep.subr.bf16.mxu0 %v496
  %550 = vmatpush1.bf16.msra.mxu0 %v495
  %551 = vmatprep.subr.bf16.mxu0 %v500
  %552 = vmatpush1.bf16.msra.mxu0 %v499
  %553 = vmatprep.subr.bf16.mxu0 %v504
  %554 = vmatpush1.bf16.msra.mxu0 %v503
  %555 = vmatprep.subr.bf16.mxu0 0
  %556 = vmatpush1.bf16.msra.mxu0 0
  %557 = vmatprep.subr.bf16.mxu0 0
  %558 = vmatpush1.bf16.msra.mxu0 0
  %559 = vmatprep.subr.bf16.mxu0 0
  %560 = vmatpush1.bf16.msra.mxu0 0
  %561 = vmatprep.subr.bf16.mxu0 0
  %562 = vmatpush1.bf16.msra.mxu0 0
  %563 = vmatprep.subr.bf16.mxu0 0
  %564 = vmatpush1.bf16.msra.mxu0 0
  %565 = vmatprep.subr.bf16.mxu0 0
  %566 = vmatpush1.bf16.msra.mxu0 0
  %567 = vmatprep.subr.bf16.mxu0 0
  %568 = vmatpush1.bf16.msra.mxu0 0
  %569 = vmatprep.subr.bf16.mxu0 0
  %570 = vmatpush1.bf16.msra.mxu0 0
  %571 = vmatprep.mubr.bf16.mxu0 0
  %572 = vmatmul.mubr.bf16.gmra.mrb[0].mxu0 %v324
  %v573 = vpop.f32.mrb[0].mxu0
  %v574 = vadd.f32 %v362, %v573
  %v575 = vpop.f32.mrb[0].mxu0
  %v576 = vadd.f32 %v366, %v575
  %v577 = vpop.f32.mrb[0].mxu0
  %v578 = vpop.f32.mrb[0].mxu0
  %579 = vdwg.mxu0
  %580 = vmatprep.subr.bf16.mxu0 %v478
  %581 = vmatpush1.bf16.msra.mxu0 %v477
  %582 = vmatprep.subr.bf16.mxu0 %v482
  %583 = vmatpush1.bf16.msra.mxu0 %v481
  %584 = vmatprep.subr.bf16.mxu0 %v486
  %585 = vmatpush1.bf16.msra.mxu0 %v485
  %586 = vmatprep.subr.bf16.mxu0 %v490
  %587 = vmatpush1.bf16.msra.mxu0 %v489
  %588 = vmatprep.subr.bf16.mxu0 %v494
  %589 = vmatpush1.bf16.msra.mxu0 %v493
  %590 = vmatprep.subr.bf16.mxu0 %v498
  %591 = vmatpush1.bf16.msra.mxu0 %v497
  %592 = vmatprep.subr.bf16.mxu0 %v502
  %593 = vmatpush1.bf16.msra.mxu0 %v501
  %594 = vmatprep.subr.bf16.mxu0 %v506
  %595 = vmatpush1.bf16.msra.mxu0 %v505
  %596 = vmatprep.subr.bf16.mxu0 0
  %597 = vmatpush1.bf16.msra.mxu0 0
  %598 = vmatprep.subr.bf16.mxu0 0
  %599 = vmatpush1.bf16.msra.mxu0 0
  %600 = vmatprep.subr.bf16.mxu0 0
  %601 = vmatpush1.bf16.msra.mxu0 0
  %602 = vmatprep.subr.bf16.mxu0 0
  %603 = vmatpush1.bf16.msra.mxu0 0
  %604 = vmatprep.subr.bf16.mxu0 0
  %605 = vmatpush1.bf16.msra.mxu0 0
  %606 = vmatprep.subr.bf16.mxu0 0
  %607 = vmatpush1.bf16.msra.mxu0 0
  %608 = vmatprep.subr.bf16.mxu0 0
  %609 = vmatpush1.bf16.msra.mxu0 0
  %610 = vmatprep.subr.bf16.mxu0 0
  %611 = vmatpush1.bf16.msra.mxu0 0
  %612 = vmatprep.mubr.bf16.mxu0 0
  %613 = vmatmul.mubr.bf16.gmra.mrb[0].mxu0 %v324
  %v614 = vpop.f32.mrb[0].mxu0
  %v615 = vadd.f32 %v370, %v614
  %v616 = vpop.f32.mrb[0].mxu0
  %v617 = vadd.f32 %v374, %v616
  %v618 = vpop.f32.mrb[0].mxu0
  %v619 = vpop.f32.mrb[0].mxu0
  %620 = vdwg.mxu0
  %v621 = vmax.f32 %v574, 0.0
  %v622 = vmax.f32 %v576, 0.0
  %v623 = vmax.f32 %v615, 0.0
  %v624 = vmax.f32 %v617, 0.0
  %v625 = vpack.c.bf16 %v621, %v621
  %v626 = vpack.c.bf16 %v622, %v622
  %v627 = vpack.c.bf16 %v623, %v623
  %v628 = vpack.c.bf16 %v624, %v624
  %v629 = vld [vmem:[%s9] sm:$0xf]
  %v630 = vld [vmem:[%s9 + $0x4] sm:$0xf]
  %v631 = vld [vmem:[%s9 + $0x8] sm:$0xf]
  %v632 = vld [vmem:[%s9 + $0xc] sm:$0xf]
  %v633 = vld [vmem:[%s9 + $0x10] sm:$0xf]
  %v634 = vld [vmem:[%s9 + $0x14] sm:$0xf]
  %v635 = vld [vmem:[%s9 + $0x18] sm:$0xf]
  %v636 = vld [vmem:[%s9 + $0x1c] sm:$0xf]
  %v637 = vld [vmem:[%s9 + $0x20] sm:$0xf]
  %v638 = vld [vmem:[%s9 + $0x24] sm:$0xf]
  %v639 = vld [vmem:[%s9 + $0x28] sm:$0xf]
  %v640 = vld [vmem:[%s9 + $0x2c] sm:$0xf]
  %v641 = vld [vmem:[%s9 + $0x30] sm:$0xf]
  %v642 = vld [vmem:[%s9 + $0x34] sm:$0xf]
  %v643 = vld [vmem:[%s9 + $0x38] sm:$0xf]
  %v644 = vld [vmem:[%s9 + $0x3c] sm:$0xf]
  %v645 = vld [vmem:[%s9 + $0x40] sm:$0xf]
  %v646 = vld [vmem:[%s9 + $0x44] sm:$0xf]
  %v647 = vld [vmem:[%s9 + $0x48] sm:$0xf]
  %v648 = vld [vmem:[%s9 + $0x4c] sm:$0xf]
  %v649 = vld [vmem:[%s9 + $0x50] sm:$0xf]
  %v650 = vld [vmem:[%s9 + $0x54] sm:$0xf]
  %v651 = vld [vmem:[%s9 + $0x58] sm:$0xf]
  %v652 = vld [vmem:[%s9 + $0x5c] sm:$0xf]
  %v653 = vld [vmem:[%s9 + $0x60] sm:$0xf]
  %v654 = vld [vmem:[%s9 + $0x64] sm:$0xf]
  %v655 = vld [vmem:[%s9 + $0x68] sm:$0xf]
  %v656 = vld [vmem:[%s9 + $0x6c] sm:$0xf]
  %v657 = vld [vmem:[%s9 + $0x70] sm:$0xf]
  %v658 = vld [vmem:[%s9 + $0x74] sm:$0xf]
  %v659 = vld [vmem:[%s9 + $0x78] sm:$0xf]
  %v660 = vld [vmem:[%s9 + $0x7c] sm:$0xf]
  %v661 = vld [vmem:[%s9 + $0x80] sm:$0xf]
  %v662 = vld [vmem:[%s9 + $0x84] sm:$0xf]
  %v663 = vld [vmem:[%s9 + $0x88] sm:$0xf]
  %v664 = vld [vmem:[%s9 + $0x8c] sm:$0xf]
  %v665 = vld [vmem:[%s9 + $0x90] sm:$0xf]
  %v666 = vld [vmem:[%s9 + $0x94] sm:$0xf]
  %v667 = vld [vmem:[%s9 + $0x98] sm:$0xf]
  %v668 = vld [vmem:[%s9 + $0x9c] sm:$0xf]
  %v669 = vld [vmem:[%s9 + $0xa0] sm:$0xf]
  %v670 = vld [vmem:[%s9 + $0xa4] sm:$0xf]
  %v671 = vld [vmem:[%s9 + $0xa8] sm:$0xf]
  %v672 = vld [vmem:[%s9 + $0xac] sm:$0xf]
  %v673 = vld [vmem:[%s9 + $0xb0] sm:$0xf]
  %v674 = vld [vmem:[%s9 + $0xb4] sm:$0xf]
  %v675 = vld [vmem:[%s9 + $0xb8] sm:$0xf]
  %v676 = vld [vmem:[%s9 + $0xbc] sm:$0xf]
  %v677 = vld [vmem:[%s9 + $0xc0] sm:$0xf]
  %v678 = vld [vmem:[%s9 + $0xc4] sm:$0xf]
  %v679 = vld [vmem:[%s9 + $0xc8] sm:$0xf]
  %v680 = vld [vmem:[%s9 + $0xcc] sm:$0xf]
  %v681 = vld [vmem:[%s9 + $0xd0] sm:$0xf]
  %v682 = vld [vmem:[%s9 + $0xd4] sm:$0xf]
  %v683 = vld [vmem:[%s9 + $0xd8] sm:$0xf]
  %v684 = vld [vmem:[%s9 + $0xdc] sm:$0xf]
  %v685 = vld [vmem:[%s9 + $0xe0] sm:$0xf]
  %v686 = vld [vmem:[%s9 + $0xe4] sm:$0xf]
  %v687 = vld [vmem:[%s9 + $0xe8] sm:$0xf]
  %v688 = vld [vmem:[%s9 + $0xec] sm:$0xf]
  %v689 = vld [vmem:[%s9 + $0xf0] sm:$0xf]
  %v690 = vld [vmem:[%s9 + $0xf4] sm:$0xf]
  %v691 = vld [vmem:[%s9 + $0xf8] sm:$0xf]
  %v692 = vld [vmem:[%s9 + $0xfc] sm:$0xf]
  %v693 = vld [vmem:[%s10] sm:$0x1]
  %v695 = vlaneseq
  %v696 = vshrl.u32 %v695, 7
  %v697 = vsub.s32 0, %v696
  %v698 = vrot.slane %v693, %v697
  %v764 = vunpack.c.l.b16 %v629
  %v765 = vunpack.c.l.b16 %v630
  %v766 = vunpack.c.l.b16 %v631
  %v767 = vunpack.c.l.b16 %v632
  %v768 = vunpack.c.l.b16 %v633
  %v769 = vunpack.c.l.b16 %v634
  %v770 = vunpack.c.l.b16 %v635
  %v771 = vunpack.c.l.b16 %v636
  %v772 = vunpack.c.l.b16 %v637
  %v773 = vunpack.c.l.b16 %v638
  %v774 = vunpack.c.l.b16 %v639
  %v775 = vunpack.c.l.b16 %v640
  %v776 = vunpack.c.l.b16 %v641
  %v777 = vunpack.c.l.b16 %v642
  %v778 = vunpack.c.l.b16 %v643
  %v779 = vunpack.c.l.b16 %v644
  %v780 = vunpack.c.l.b16 %v645
  %v781 = vunpack.c.l.b16 %v646
  %v782 = vunpack.c.l.b16 %v647
  %v783 = vunpack.c.l.b16 %v648
  %v784 = vunpack.c.l.b16 %v649
  %v785 = vunpack.c.l.b16 %v650
  %v786 = vunpack.c.l.b16 %v651
  %v787 = vunpack.c.l.b16 %v652
  %v788 = vunpack.c.l.b16 %v653
  %v789 = vunpack.c.l.b16 %v654
  %v790 = vunpack.c.l.b16 %v655
  %v791 = vunpack.c.l.b16 %v656
  %v792 = vunpack.c.l.b16 %v657
  %v793 = vunpack.c.l.b16 %v658
  %v794 = vunpack.c.l.b16 %v659
  %v795 = vunpack.c.l.b16 %v660
  %v796 = vunpack.c.l.b16 %v661
  %v797 = vunpack.c.l.b16 %v662
  %v798 = vunpack.c.l.b16 %v663
  %v799 = vunpack.c.l.b16 %v664
  %v800 = vunpack.c.l.b16 %v665
  %v801 = vunpack.c.l.b16 %v666
  %v802 = vunpack.c.l.b16 %v667
  %v803 = vunpack.c.l.b16 %v668
  %v804 = vunpack.c.l.b16 %v669
  %v805 = vunpack.c.l.b16 %v670
  %v806 = vunpack.c.l.b16 %v671
  %v807 = vunpack.c.l.b16 %v672
  %v808 = vunpack.c.l.b16 %v673
  %v809 = vunpack.c.l.b16 %v674
  %v810 = vunpack.c.l.b16 %v675
  %v811 = vunpack.c.l.b16 %v676
  %v812 = vunpack.c.l.b16 %v677
  %v813 = vunpack.c.l.b16 %v678
  %v814 = vunpack.c.l.b16 %v679
  %v815 = vunpack.c.l.b16 %v680
  %v816 = vunpack.c.l.b16 %v681
  %v817 = vunpack.c.l.b16 %v682
  %v818 = vunpack.c.l.b16 %v683
  %v819 = vunpack.c.l.b16 %v684
  %v820 = vunpack.c.l.b16 %v685
  %v821 = vunpack.c.l.b16 %v686
  %v822 = vunpack.c.l.b16 %v687
  %v823 = vunpack.c.l.b16 %v688
  %v824 = vunpack.c.l.b16 %v689
  %v825 = vunpack.c.l.b16 %v690
  %v826 = vunpack.c.l.b16 %v691
  %v827 = vunpack.c.l.b16 %v692
  %v828 = vpack.c.b16 %v765, %v764
  %v829 = vpack.c.b16 %v767, %v766
  %v830 = vpack.c.b16 %v769, %v768
  %v831 = vpack.c.b16 %v771, %v770
  %v832 = vpack.c.b16 %v773, %v772
  %v833 = vpack.c.b16 %v775, %v774
  %v834 = vpack.c.b16 %v777, %v776
  %v835 = vpack.c.b16 %v779, %v778
  %v836 = vpack.c.b16 %v781, %v780
  %v837 = vpack.c.b16 %v783, %v782
  %v838 = vpack.c.b16 %v785, %v784
  %v839 = vpack.c.b16 %v787, %v786
  %v840 = vpack.c.b16 %v789, %v788
  %v841 = vpack.c.b16 %v791, %v790
  %v842 = vpack.c.b16 %v793, %v792
  %v843 = vpack.c.b16 %v795, %v794
  %v844 = vpack.c.b16 %v797, %v796
  %v845 = vpack.c.b16 %v799, %v798
  %v846 = vpack.c.b16 %v801, %v800
  %v847 = vpack.c.b16 %v803, %v802
  %v848 = vpack.c.b16 %v805, %v804
  %v849 = vpack.c.b16 %v807, %v806
  %v850 = vpack.c.b16 %v809, %v808
  %v851 = vpack.c.b16 %v811, %v810
  %v852 = vpack.c.b16 %v813, %v812
  %v853 = vpack.c.b16 %v815, %v814
  %v854 = vpack.c.b16 %v817, %v816
  %v855 = vpack.c.b16 %v819, %v818
  %v856 = vpack.c.b16 %v821, %v820
  %v857 = vpack.c.b16 %v823, %v822
  %v858 = vpack.c.b16 %v825, %v824
  %v859 = vpack.c.b16 %v827, %v826
  %892 = vmatprep.subr.bf16.mxu0 0
  %893 = vmatpush1.bf16.msra.mxu0 %v828
  %894 = vmatprep.subr.bf16.mxu0 0
  %895 = vmatpush1.bf16.msra.mxu0 %v829
  %896 = vmatprep.subr.bf16.mxu0 0
  %897 = vmatpush1.bf16.msra.mxu0 %v830
  %898 = vmatprep.subr.bf16.mxu0 0
  %899 = vmatpush1.bf16.msra.mxu0 %v831
  %900 = vmatprep.subr.bf16.mxu0 0
  %901 = vmatpush1.bf16.msra.mxu0 %v832
  %902 = vmatprep.subr.bf16.mxu0 0
  %903 = vmatpush1.bf16.msra.mxu0 %v833
  %904 = vmatprep.subr.bf16.mxu0 0
  %905 = vmatpush1.bf16.msra.mxu0 %v834
  %906 = vmatprep.subr.bf16.mxu0 0
  %907 = vmatpush1.bf16.msra.mxu0 %v835
  %908 = vmatprep.subr.bf16.mxu0 0
  %909 = vmatpush1.bf16.msra.mxu0 %v836
  %910 = vmatprep.subr.bf16.mxu0 0
  %911 = vmatpush1.bf16.msra.mxu0 %v837
  %912 = vmatprep.subr.bf16.mxu0 0
  %913 = vmatpush1.bf16.msra.mxu0 %v838
  %914 = vmatprep.subr.bf16.mxu0 0
  %915 = vmatpush1.bf16.msra.mxu0 %v839
  %916 = vmatprep.subr.bf16.mxu0 0
  %917 = vmatpush1.bf16.msra.mxu0 %v840
  %918 = vmatprep.subr.bf16.mxu0 0
  %919 = vmatpush1.bf16.msra.mxu0 %v841
  %920 = vmatprep.subr.bf16.mxu0 0
  %921 = vmatpush1.bf16.msra.mxu0 %v842
  %922 = vmatprep.subr.bf16.mxu0 0
  %923 = vmatpush1.bf16.msra.mxu0 %v843
  %924 = vmatprep.mubr.bf16.mxu0 %v626
  %925 = vmatmul.mubr.bf16.gmra.mrb[0].mxu0 %v625
  %v926 = vpop.f32.mrb[0].mxu0
  %v927 = vadd.f32 %v698, %v926
  %v928 = vpop.f32.mrb[0].mxu0
  %v929 = vpop.f32.mrb[0].mxu0
  %v930 = vpop.f32.mrb[0].mxu0
  %931 = vdwg.mxu0
  %932 = vmatprep.subr.bf16.mxu0 0
  %933 = vmatpush1.bf16.msra.mxu0 %v844
  %934 = vmatprep.subr.bf16.mxu0 0
  %935 = vmatpush1.bf16.msra.mxu0 %v845
  %936 = vmatprep.subr.bf16.mxu0 0
  %937 = vmatpush1.bf16.msra.mxu0 %v846
  %938 = vmatprep.subr.bf16.mxu0 0
  %939 = vmatpush1.bf16.msra.mxu0 %v847
  %940 = vmatprep.subr.bf16.mxu0 0
  %941 = vmatpush1.bf16.msra.mxu0 %v848
  %942 = vmatprep.subr.bf16.mxu0 0
  %943 = vmatpush1.bf16.msra.mxu0 %v849
  %944 = vmatprep.subr.bf16.mxu0 0
  %945 = vmatpush1.bf16.msra.mxu0 %v850
  %946 = vmatprep.subr.bf16.mxu0 0
  %947 = vmatpush1.bf16.msra.mxu0 %v851
  %948 = vmatprep.subr.bf16.mxu0 0
  %949 = vmatpush1.bf16.msra.mxu0 %v852
  %950 = vmatprep.subr.bf16.mxu0 0
  %951 = vmatpush1.bf16.msra.mxu0 %v853
  %952 = vmatprep.subr.bf16.mxu0 0
  %953 = vmatpush1.bf16.msra.mxu0 %v854
  %954 = vmatprep.subr.bf16.mxu0 0
  %955 = vmatpush1.bf16.msra.mxu0 %v855
  %956 = vmatprep.subr.bf16.mxu0 0
  %957 = vmatpush1.bf16.msra.mxu0 %v856
  %958 = vmatprep.subr.bf16.mxu0 0
  %959 = vmatpush1.bf16.msra.mxu0 %v857
  %960 = vmatprep.subr.bf16.mxu0 0
  %961 = vmatpush1.bf16.msra.mxu0 %v858
  %962 = vmatprep.subr.bf16.mxu0 0
  %963 = vmatpush1.bf16.msra.mxu0 %v859
  %964 = vmatprep.mubr.bf16.mxu0 %v628
  %965 = vmatmul.mubr.bf16.gmra.mrb[0].mxu0 %v627
  %v966 = vpop.f32.mrb[0].mxu0
  %v967 = vadd.f32 %v927, %v966
  %v968 = vpop.f32.mrb[0].mxu0
  %v969 = vpop.f32.mrb[0].mxu0
  %v970 = vpop.f32.mrb[0].mxu0
  %971 = vdwg.mxu0
  %972 = vst [vmem:[%s11] sm:$0xff] %v967
  // Predicated region
  $region46: #{noisy_dqn_forward.1} parent=0 // pred_check
    _
  $region47: #{noisy_dqn_forward.1} parent=0 // pred_check_branch
    %974 = sbr.rel (0) target = $region49
  $region48: #{noisy_dqn_forward.1} parent=0 // pred_region
    _
  $region49: #{noisy_dqn_forward.1} parent=0 // pred_fallthru
    _
  // Predicated region
  $region50: #{noisy_dqn_forward.1} parent=0 // pred_check
    _
  $region51: #{noisy_dqn_forward.1} parent=0 // pred_check_branch
    %976 = sbr.rel (0) target = $region53
  $region52: #{noisy_dqn_forward.1} parent=0 // pred_region
    _
  $region53: #{noisy_dqn_forward.1} parent=0 // pred_fallthru
    _

</llo_original>
